<compile_context>
chip_gen: v7x
topology: tpu7x:2x2x1
jax: 0.10.0
libtpu: 0.0.40
codegen_flags: <defaults>
</compile_context>

<pallas_src>
import jax
import jax.numpy as jnp
import numpy as np
from jax import lax
from jax.experimental import pallas as pl
from jax.experimental.pallas import tpu as pltpu

_MIB = 1024 * 1024
_MXU_MIN_CHANNELS = 32   # use the MXU formulation when min(I, O) >= this


# ---------------------------------------------------------------------------
# VMEM budgeting (generation-aware)
# ---------------------------------------------------------------------------
def _vmem_budget():
    """Returns (per-step tile budget bytes, vmem_limit_bytes)."""
    cap = 64 * _MIB
    try:  # conservative (v7x-sized) default if the query is unavailable
        cap = int(getattr(pltpu.get_tpu_info(), "vmem_capacity_bytes", cap))
    except Exception:
        pass
    if cap <= 64 * _MIB:
        # v7x-class: 64 MiB physical VMEM per TensorCore -> leave headroom
        return 20 * _MIB, 44 * _MIB
    # v5e / v6e: 128 MiB physical VMEM -> larger tiles, amortize per-step cost
    return 48 * _MIB, 80 * _MIB


# ---------------------------------------------------------------------------
# MXU path: batched per-mode matmul  (Mt, Bt, 2I) @ (Mt, 2I, 2O) -> (Mt, Bt, 2O)
# ---------------------------------------------------------------------------
def _spectral_mix_mxu_kernel(x_ref, w_ref, o_ref):
    # x_ref: (Mt, Bt, 2I)  w_ref: (Mt, 2I, 2O)  o_ref: (Mt, Bt, 2O)   all f32
    # TODO(synk): feed bf16 x/w planes on v6e/v7x (halves HBM traffic & VMEM);
    # kept f32 here to preserve tight numerical parity with the c64 reference.
    o_ref[...] = jnp.einsum(
        "mbk,mko->mbo", x_ref[...], w_ref[...],
        preferred_element_type=jnp.float32,
        precision=lax.Precision.HIGHEST)


def _choose_tiles_mxu(B, I, O, M, budget_bytes):
    if B % 8 == 0:
        bt_cands = [bt for bt in (256, 128, 64, 32, 16, 8) if B % bt == 0]
    else:
        bt_cands = [B]                       # full-dim block (8,128 rule)
    m8 = ((M + 7) // 8) * 8
    if m8 <= 512:
        mt_cands = [m8] + [t for t in (256, 128, 64, 32, 16, 8) if t < m8]
    else:
        mt_cands = [512, 256, 128, 64, 32]

    def step_bytes(bt, mt):
        # double-buffered x / w / out blocks + matmul result temporary, f32
        blocks = (bt * 2 * I + 2 * I * 2 * O + bt * 2 * O) * mt * 4 * 2
        temps = bt * 2 * O * mt * 4
        return blocks + temps

    best = None
    for bt in bt_cands:
        for mt in mt_cands:
            sb = step_bytes(bt, mt)
            if sb <= budget_bytes and (best is None or bt * mt > best[0] * best[1]):
                best = (bt, mt, sb)
    if best is None:                         # smallest legal tiles as fallback
        bt, mt = min(bt_cands), min(mt_cands)
        best = (bt, mt, step_bytes(bt, mt))
    bt, mt, sb = best
    m_pad = ((M + mt - 1) // mt) * mt
    return bt, mt, m_pad, sb


def _spectral_mix_mxu(x_bands, w_bands):
    """x_bands: (2, I, B, m1, m2) c64, w_bands: (2, I, O, m1, m2) c64.
    Returns (2, B, O, m1, m2) c64."""
    nbands, I, B, m1, m2 = x_bands.shape
    O = w_bands.shape[2]
    M = m1 * m2

    budget, vmem_limit = _vmem_budget()
    B_tile, M_tile, M_pad, _ = _choose_tiles_mxu(B, I, O, M, budget)

    # Mode-major operands:  X = [xr | xi]  (M, B, 2I),
    #                       W = [[wr, wi], [-wi, wr]]  (M, 2I, 2O).
    xr = jnp.transpose(jnp.real(x_bands), (0, 3, 4, 2, 1)).reshape(nbands, M, B, I)
    xi = jnp.transpose(jnp.imag(x_bands), (0, 3, 4, 2, 1)).reshape(nbands, M, B, I)
    xcat = jnp.concatenate([xr, xi], axis=-1).astype(jnp.float32)        # (n,M,B,2I)

    wr = jnp.transpose(jnp.real(w_bands), (0, 3, 4, 1, 2)).reshape(nbands, M, I, O)
    wi = jnp.transpose(jnp.imag(w_bands), (0, 3, 4, 1, 2)).reshape(nbands, M, I, O)
    wcat = jnp.concatenate(
        [jnp.concatenate([wr, wi], axis=-1),
         jnp.concatenate([-wi, wr], axis=-1)], axis=-2).astype(jnp.float32)  # (n,M,2I,2O)

    if M_pad > M:
        xcat = jnp.pad(xcat, ((0, 0), (0, M_pad - M), (0, 0), (0, 0)))
        wcat = jnp.pad(wcat, ((0, 0), (0, M_pad - M), (0, 0), (0, 0)))

    # batch innermost -> the (M_tile, 2I, 2O) weight block index is unchanged
    # across consecutive steps, so it stays VMEM-resident across batch tiles.
    grid = (nbands, M_pad // M_tile, B // B_tile)
    x_spec = pl.BlockSpec((None, M_tile, B_tile, 2 * I), lambda n, m, b: (n, m, b, 0))
    w_spec = pl.BlockSpec((None, M_tile, 2 * I, 2 * O), lambda n, m, b: (n, m, 0, 0))
    o_spec = pl.BlockSpec((None, M_tile, B_tile, 2 * O), lambda n, m, b: (n, m, b, 0))

    cost = pl.CostEstimate(
        flops=8 * nbands * B * I * O * M_pad,
        transcendentals=0,
        bytes_accessed=4 * nbands * M_pad * (B * 2 * I + 2 * I * 2 * O + B * 2 * O))

    out = pl.pallas_call(
        _spectral_mix_mxu_kernel,
        grid=grid,
        in_specs=[x_spec, w_spec],
        out_specs=o_spec,
        out_shape=jax.ShapeDtypeStruct((nbands, M_pad, B, 2 * O), jnp.float32),
        compiler_params=pltpu.CompilerParams(
            dimension_semantics=("parallel", "parallel", "parallel"),
            vmem_limit_bytes=vmem_limit),
        cost_estimate=cost,
    )(xcat, wcat)

    out = out[:, :M]                                         # strip mode padding
    outc = (out[..., :O] + 1j * out[..., O:]).astype(jnp.complex64)  # (n,M,B,O)
    outc = outc.reshape(nbands, m1, m2, B, O)
    return jnp.transpose(outc, (0, 3, 4, 1, 2))              # (n,B,O,m1,m2)


# ---------------------------------------------------------------------------
# VPU fallback path (small channel counts): 4-mult complex accumulate in place
# ---------------------------------------------------------------------------
def _spectral_mix_vpu_kernel(xr_ref, xi_ref, wr_ref, wi_ref, or_ref, oi_ref):
    # xr/xi: (I, Bt, Mt)   wr/wi: (I, O_pad, Mt)   or/oi: (Bt, O_pad, Mt)  f32
    I = xr_ref.shape[0]
    or_ref[...] = jnp.zeros_like(or_ref)
    oi_ref[...] = jnp.zeros_like(oi_ref)

    def step(i):
        xr = xr_ref[i][:, None, :]          # (Bt, 1, Mt)
        xi = xi_ref[i][:, None, :]
        wr = wr_ref[i][None, :, :]          # (1, O_pad, Mt)
        wi = wi_ref[i][None, :, :]
        # plain 4-mult complex product, accumulated directly into the output
        or_ref[...] += xr * wr - xi * wi
        oi_ref[...] += xr * wi + xi * wr

    if I <= 8:
        for i in range(I):                  # tiny static channel count: unroll
            step(i)
    else:
        pl.loop(0, I)(step)                 # bound live ranges with a real loop


def _choose_tiles_vpu(B, I, O_pad, M_pad, budget_bytes):
    if B % 8 == 0:
        bt_cands = [bt for bt in (128, 64, 32, 16, 8) if B % bt == 0]
    else:
        bt_cands = [B]                      # full-dim block (8,128 rule)
    mt_cands = [mt for mt in (4096, 2048, 1024, 512, 256, 128) if M_pad % mt == 0]
    if M_pad <= 4096 and M_pad not in mt_cands:
        mt_cands.insert(0, M_pad)
    if not mt_cands:
        mt_cands = [128]

    def step_bytes(bt, mt):
        # double-buffered x/w/out blocks (real+imag, f32) + elementwise temps
        blocks = (I * bt + I * O_pad + bt * O_pad) * mt * 2 * 4 * 2
        temps = 2 * bt * O_pad * mt * 4
        return blocks + temps

    best = None
    for bt in bt_cands:
        for mt in mt_cands:
            sb = step_bytes(bt, mt)
            if sb <= budget_bytes and (best is None or bt * mt > best[0] * best[1]):
                best = (bt, mt, sb)
    if best is None:                        # smallest legal tiles as fallback
        bt, mt = min(bt_cands), min(mt_cands)
        best = (bt, mt, step_bytes(bt, mt))
    return best


def _spectral_mix_vpu(x_bands, w_bands):
    """x_bands: (2, I, B, m1, m2) c64, w_bands: (2, I, O, m1, m2) c64.
    Returns (2, B, O, m1, m2) c64."""
    nbands, I, B, m1, m2 = x_bands.shape
    O = w_bands.shape[2]
    M = m1 * m2
    M_pad = ((M + 127) // 128) * 128        # lane-dense flattened-mode axis
    O_pad = ((O + 7) // 8) * 8              # sublane-dense weight/output vregs

    xr = jnp.real(x_bands).reshape(nbands, I, B, M).astype(jnp.float32)
    xi = jnp.imag(x_bands).reshape(nbands, I, B, M).astype(jnp.float32)
    wr = jnp.real(w_bands).reshape(nbands, I, O, M).astype(jnp.float32)
    wi = jnp.imag(w_bands).reshape(nbands, I, O, M).astype(jnp.float32)

    if M_pad > M:
        pad_m = ((0, 0), (0, 0), (0, 0), (0, M_pad - M))
        xr, xi = jnp.pad(xr, pad_m), jnp.pad(xi, pad_m)
        wr, wi = jnp.pad(wr, pad_m), jnp.pad(wi, pad_m)
    if O_pad > O:
        pad_o = ((0, 0), (0, 0), (0, O_pad - O), (0, 0))
        wr, wi = jnp.pad(wr, pad_o), jnp.pad(wi, pad_o)

    budget, vmem_limit = _vmem_budget()
    B_tile, M_tile, _ = _choose_tiles_vpu(B, I, O_pad, M_pad, budget)

    # batch innermost -> the (I, O_pad, M_tile) weight block stays VMEM-resident
    grid = (nbands, M_pad // M_tile, B // B_tile)
    x_spec = pl.BlockSpec((None, I, B_tile, M_tile), lambda n, m, b: (n, 0, b, m))
    w_spec = pl.BlockSpec((None, I, O_pad, M_tile), lambda n, m, b: (n, 0, 0, m))
    o_spec = pl.BlockSpec((None, B_tile, O_pad, M_tile), lambda n, m, b: (n, b, 0, m))

    cost = pl.CostEstimate(
        flops=8 * nbands * B * I * O * M,
        transcendentals=0,
        bytes_accessed=4 * (2 * nbands * I * B * M_pad
                            + 2 * nbands * I * O_pad * M_pad
                            + 2 * nbands * B * O_pad * M_pad))

    out_r, out_i = pl.pallas_call(
        _spectral_mix_vpu_kernel,
        grid=grid,
        in_specs=[x_spec, x_spec, w_spec, w_spec],
        out_specs=(o_spec, o_spec),
        out_shape=(jax.ShapeDtypeStruct((nbands, B, O_pad, M_pad), jnp.float32),
                   jax.ShapeDtypeStruct((nbands, B, O_pad, M_pad), jnp.float32)),
        compiler_params=pltpu.CompilerParams(
            dimension_semantics=("parallel", "parallel", "parallel"),
            vmem_limit_bytes=vmem_limit),
        cost_estimate=cost,
    )(xr, xi, wr, wi)

    out = (out_r[:, :, :O, :M] + 1j * out_i[:, :, :O, :M]).astype(jnp.complex64)
    return out.reshape(nbands, B, O, m1, m2)


def _spectral_mix(x_bands, w_bands):
    """Dispatch: MXU formulation at production channel counts, VPU otherwise."""
    I = x_bands.shape[1]
    O = w_bands.shape[2]
    if min(I, O) >= _MXU_MIN_CHANNELS:
        return _spectral_mix_mxu(x_bands, w_bands)
    return _spectral_mix_vpu(x_bands, w_bands)


# ---------------------------------------------------------------------------
# Module
# ---------------------------------------------------------------------------
class SpectralConv2d:
    """JAX / Pallas port of the PyTorch SpectralConv2d module (forward only)."""

    def __init__(self, in_channels, out_channels, modes1, modes2, key):
        self.in_channels = in_channels
        self.out_channels = out_channels
        self.modes1 = modes1
        self.modes2 = modes2
        scale = 1.0 / (in_channels * out_channels)
        k1, k2, k3, k4 = jax.random.split(key, 4)
        shape = (in_channels, out_channels, modes1, modes2)
        # torch.rand(..., dtype=cfloat) draws real & imag parts ~ U[0, 1)
        self.weights1 = scale * (
            jax.random.uniform(k1, shape, jnp.float32)
            + 1j * jax.random.uniform(k2, shape, jnp.float32)
        ).astype(jnp.complex64)
        self.weights2 = scale * (
            jax.random.uniform(k3, shape, jnp.float32)
            + 1j * jax.random.uniform(k4, shape, jnp.float32)
        ).astype(jnp.complex64)

    def __call__(self, x):
        # x: (B, C_in, H, W) float32
        B, _, H, W = x.shape
        m1, m2 = self.modes1, self.modes2
        Wf = W // 2 + 1
        O = self.out_channels

        # channel-major BEFORE the FFT: spectrum comes out already in the
        # layout the kernel wants, no post-FFT transpose of complex data.
        x_cm = jnp.transpose(x, (1, 0, 2, 3))                    # (I, B, H, W)
        x_ft = jnp.fft.rfft2(x_cm, axes=(-2, -1))                # (I, B, H, Wf)

        # Both retained bands go through ONE fused pallas_call.
        x_bands = jnp.stack(
            [x_ft[:, :, :m1, :m2], x_ft[:, :, H - m1:, :m2]], axis=0)  # (2,I,B,m1,m2)
        w_bands = jnp.stack([self.weights1, self.weights2], axis=0)    # (2,I,O,m1,m2)
        out_bands = _spectral_mix(x_bands, w_bands)              # (2, B, O, m1, m2)
        low, high = out_bands[0], out_bands[1]

        zpad_w = jnp.zeros((B, O, m1, Wf - m2), jnp.complex64)
        row_low = jnp.concatenate([low, zpad_w], axis=-1)
        row_high = jnp.concatenate([high, zpad_w], axis=-1)
        if H >= 2 * m1:
            # assemble out_ft by concatenation (no full-array zeros + scatter)
            mid = jnp.zeros((B, O, H - 2 * m1, Wf), jnp.complex64)
            out_ft = jnp.concatenate([row_low, mid, row_high], axis=-2)
        else:
            # bands overlap: keep PyTorch's in-place write order (weights2 wins)
            out_ft = jnp.zeros((B, O, H, Wf), jnp.complex64)
            out_ft = out_ft.at[:, :, :m1, :m2].set(low)
            out_ft = out_ft.at[:, :, H - m1:, :m2].set(high)

        return jnp.fft.irfft2(out_ft, s=(H, W), axes=(-2, -1)).astype(jnp.float32)


# ---------------------------------------------------------------------------
# Pure-JAX reference (replicates the torch forward) for verification
# ---------------------------------------------------------------------------
def _reference_forward(x, w1, w2, m1, m2, out_channels):
    B, _, H, W = x.shape
    hp = lax.Precision.HIGHEST
    x_ft = jnp.fft.rfft2(x, axes=(-2, -1))
    out_ft = jnp.zeros((B, out_channels, H, W // 2 + 1), dtype=jnp.complex64)
    out_ft = out_ft.at[:, :, :m1, :m2].set(
        jnp.einsum("bixy,ioxy->boxy", x_ft[:, :, :m1, :m2], w1, precision=hp))
    out_ft = out_ft.at[:, :, H - m1:, :m2].set(
        jnp.einsum("bixy,ioxy->boxy", x_ft[:, :, -m1:, :m2], w2, precision=hp))
    return jnp.fft.irfft2(out_ft, s=(H, W), axes=(-2, -1)).astype(jnp.float32)


if __name__ == "__main__":
    # --- small-channel config: exercises the VPU fallback path --------------
    key = jax.random.PRNGKey(0)
    k_w, k_x = jax.random.split(key)
    B, C_in, C_out, H, W = 2, 4, 4, 16, 16
    modes1, modes2 = 4, 4

    layer = SpectralConv2d(C_in, C_out, modes1, modes2, k_w)
    x = jax.random.normal(k_x, (B, C_in, H, W), dtype=jnp.float32)
    y = jax.block_until_ready(layer(x))
    y_ref = _reference_forward(x, layer.weights1, layer.weights2,
                               modes1, modes2, C_out)
    np.testing.assert_allclose(np.asarray(y), np.asarray(y_ref),
                               rtol=1e-5, atol=1e-5)

    # --- larger-channel config: exercises the MXU (batched matmul) path -----
    k_w2, k_x2 = jax.random.split(jax.random.PRNGKey(0), 2)
    C2 = 32
    layer2 = SpectralConv2d(C2, C2, modes1, modes2, k_w2)
    x2 = jax.random.normal(k_x2, (B, C2, H, W), dtype=jnp.float32)
    y2 = jax.block_until_ready(layer2(x2))
    y2_ref = _reference_forward(x2, layer2.weights1, layer2.weights2,
                                modes1, modes2, C2)
    # tolerance leaves margin for MXU f32 pass behavior on different chips
    np.testing.assert_allclose(np.asarray(y2), np.asarray(y2_ref),
                               rtol=2e-3, atol=2e-4)

    print("KERNEL_OK")
</pallas_src>

<mosaic_0001>
module attributes {stable_mosaic.version = 11 : i64} {
  func.func @_spectral_mix_vpu_kernel(%arg0: i32, %arg1: i32, %arg2: i32, %arg3: memref<1x4x2x128xf32, #tpu.memory_space<vmem>>, %arg4: memref<1x4x2x128xf32, #tpu.memory_space<vmem>>, %arg5: memref<1x4x8x128xf32, #tpu.memory_space<vmem>>, %arg6: memref<1x4x8x128xf32, #tpu.memory_space<vmem>>, %arg7: memref<1x2x8x128xf32, #tpu.memory_space<vmem>>, %arg8: memref<1x2x8x128xf32, #tpu.memory_space<vmem>>) attributes {dimension_semantics = [#tpu.dimension_semantics<parallel>, #tpu.dimension_semantics<parallel>, #tpu.dimension_semantics<parallel>], iteration_bounds = array<i64: 2, 1, 1>, scalar_prefetch = 0 : i64, scratch_operands = 0 : i64, tpu.core_type = #tpu.core_type<tc>, window_params = [{transform_indices = @transform_0, window_bounds = array<i64: 1, 4, 2, 128>}, {transform_indices = @transform_1, window_bounds = array<i64: 1, 4, 2, 128>}, {transform_indices = @transform_2, window_bounds = array<i64: 1, 4, 8, 128>}, {transform_indices = @transform_3, window_bounds = array<i64: 1, 4, 8, 128>}, {transform_indices = @transform_4, window_bounds = array<i64: 1, 2, 8, 128>}, {transform_indices = @transform_5, window_bounds = array<i64: 1, 2, 8, 128>}]} {
    %cst = arith.constant 0.000000e+00 : f32
    %0 = vector.broadcast %cst : f32 to vector<2x8x128xf32>
    %c0 = arith.constant 0 : index
    %c0_0 = arith.constant 0 : index
    %c0_1 = arith.constant 0 : index
    %c0_2 = arith.constant 0 : index
    %1 = vector.load %arg7[%c0, %c0_0, %c0_1, %c0_2] : memref<1x2x8x128xf32, #tpu.memory_space<vmem>>, vector<1x2x8x128xf32>
    %2 = vector.shape_cast %1 : vector<1x2x8x128xf32> to vector<2x8x128xf32>
    %3 = vector.shape_cast %0 : vector<2x8x128xf32> to vector<1x2x8x128xf32>
    tpu.vector_store %arg7[%c0, %c0_0, %c0_1, %c0_2], %3 {strides = array<i32>} : memref<1x2x8x128xf32, #tpu.memory_space<vmem>>, vector<1x2x8x128xf32>,
    %cst_3 = arith.constant 0.000000e+00 : f32
    %4 = vector.broadcast %cst_3 : f32 to vector<2x8x128xf32>
    %c0_4 = arith.constant 0 : index
    %c0_5 = arith.constant 0 : index
    %c0_6 = arith.constant 0 : index
    %c0_7 = arith.constant 0 : index
    %5 = vector.load %arg8[%c0_4, %c0_5, %c0_6, %c0_7] : memref<1x2x8x128xf32, #tpu.memory_space<vmem>>, vector<1x2x8x128xf32>
    %6 = vector.shape_cast %5 : vector<1x2x8x128xf32> to vector<2x8x128xf32>
    %7 = vector.shape_cast %4 : vector<2x8x128xf32> to vector<1x2x8x128xf32>
    tpu.vector_store %arg8[%c0_4, %c0_5, %c0_6, %c0_7], %7 {strides = array<i32>} : memref<1x2x8x128xf32, #tpu.memory_space<vmem>>, vector<1x2x8x128xf32>,
    %c0_8 = arith.constant 0 : index
    %c0_9 = arith.constant 0 : index
    %c0_10 = arith.constant 0 : index
    %c0_11 = arith.constant 0 : index
    %8 = vector.load %arg3[%c0_8, %c0_9, %c0_10, %c0_11] : memref<1x4x2x128xf32, #tpu.memory_space<vmem>>, vector<1x1x2x128xf32>
    %9 = vector.shape_cast %8 : vector<1x1x2x128xf32> to vector<2x128xf32>
    %10 = vector.shape_cast %9 : vector<2x128xf32> to vector<2x1x128xf32>
    %c0_12 = arith.constant 0 : index
    %c0_13 = arith.constant 0 : index
    %c0_14 = arith.constant 0 : index
    %c0_15 = arith.constant 0 : index
    %11 = vector.load %arg4[%c0_12, %c0_13, %c0_14, %c0_15] : memref<1x4x2x128xf32, #tpu.memory_space<vmem>>, vector<1x1x2x128xf32>
    %12 = vector.shape_cast %11 : vector<1x1x2x128xf32> to vector<2x128xf32>
    %13 = vector.shape_cast %12 : vector<2x128xf32> to vector<2x1x128xf32>
    %c0_16 = arith.constant 0 : index
    %c0_17 = arith.constant 0 : index
    %c0_18 = arith.constant 0 : index
    %c0_19 = arith.constant 0 : index
    %14 = vector.load %arg5[%c0_16, %c0_17, %c0_18, %c0_19] : memref<1x4x8x128xf32, #tpu.memory_space<vmem>>, vector<1x1x8x128xf32>
    %15 = vector.shape_cast %14 : vector<1x1x8x128xf32> to vector<8x128xf32>
    %16 = vector.shape_cast %15 : vector<8x128xf32> to vector<1x8x128xf32>
    %c0_20 = arith.constant 0 : index
    %c0_21 = arith.constant 0 : index
    %c0_22 = arith.constant 0 : index
    %c0_23 = arith.constant 0 : index
    %17 = vector.load %arg6[%c0_20, %c0_21, %c0_22, %c0_23] : memref<1x4x8x128xf32, #tpu.memory_space<vmem>>, vector<1x1x8x128xf32>
    %18 = vector.shape_cast %17 : vector<1x1x8x128xf32> to vector<8x128xf32>
    %19 = vector.shape_cast %18 : vector<8x128xf32> to vector<1x8x128xf32>
    %c0_24 = arith.constant 0 : index
    %c0_25 = arith.constant 0 : index
    %c0_26 = arith.constant 0 : index
    %c0_27 = arith.constant 0 : index
    %20 = vector.load %arg7[%c0_24, %c0_25, %c0_26, %c0_27] : memref<1x2x8x128xf32, #tpu.memory_space<vmem>>, vector<1x2x8x128xf32>
    %21 = vector.shape_cast %20 : vector<1x2x8x128xf32> to vector<2x8x128xf32>
    %22 = vector.broadcast %10 : vector<2x1x128xf32> to vector<2x8x128xf32>
    %23 = vector.broadcast %16 : vector<1x8x128xf32> to vector<2x8x128xf32>
    %24 = arith.mulf %22, %23 : vector<2x8x128xf32>
    %25 = vector.broadcast %13 : vector<2x1x128xf32> to vector<2x8x128xf32>
    %26 = vector.broadcast %19 : vector<1x8x128xf32> to vector<2x8x128xf32>
    %27 = arith.mulf %25, %26 : vector<2x8x128xf32>
    %28 = arith.subf %24, %27 : vector<2x8x128xf32>
    %29 = arith.addf %21, %28 : vector<2x8x128xf32>
    %c0_28 = arith.constant 0 : index
    %c0_29 = arith.constant 0 : index
    %c0_30 = arith.constant 0 : index
    %c0_31 = arith.constant 0 : index
    %30 = vector.load %arg7[%c0_28, %c0_29, %c0_30, %c0_31] : memref<1x2x8x128xf32, #tpu.memory_space<vmem>>, vector<1x2x8x128xf32>
    %31 = vector.shape_cast %30 : vector<1x2x8x128xf32> to vector<2x8x128xf32>
    %32 = vector.shape_cast %29 : vector<2x8x128xf32> to vector<1x2x8x128xf32>
    tpu.vector_store %arg7[%c0_28, %c0_29, %c0_30, %c0_31], %32 {strides = array<i32>} : memref<1x2x8x128xf32, #tpu.memory_space<vmem>>, vector<1x2x8x128xf32>,
    %c0_32 = arith.constant 0 : index
    %c0_33 = arith.constant 0 : index
    %c0_34 = arith.constant 0 : index
    %c0_35 = arith.constant 0 : index
    %33 = vector.load %arg8[%c0_32, %c0_33, %c0_34, %c0_35] : memref<1x2x8x128xf32, #tpu.memory_space<vmem>>, vector<1x2x8x128xf32>
    %34 = vector.shape_cast %33 : vector<1x2x8x128xf32> to vector<2x8x128xf32>
    %35 = vector.broadcast %10 : vector<2x1x128xf32> to vector<2x8x128xf32>
    %36 = vector.broadcast %19 : vector<1x8x128xf32> to vector<2x8x128xf32>
    %37 = arith.mulf %35, %36 : vector<2x8x128xf32>
    %38 = vector.broadcast %13 : vector<2x1x128xf32> to vector<2x8x128xf32>
    %39 = vector.broadcast %16 : vector<1x8x128xf32> to vector<2x8x128xf32>
    %40 = arith.mulf %38, %39 : vector<2x8x128xf32>
    %41 = arith.addf %37, %40 : vector<2x8x128xf32>
    %42 = arith.addf %34, %41 : vector<2x8x128xf32>
    %c0_36 = arith.constant 0 : index
    %c0_37 = arith.constant 0 : index
    %c0_38 = arith.constant 0 : index
    %c0_39 = arith.constant 0 : index
    %43 = vector.load %arg8[%c0_36, %c0_37, %c0_38, %c0_39] : memref<1x2x8x128xf32, #tpu.memory_space<vmem>>, vector<1x2x8x128xf32>
    %44 = vector.shape_cast %43 : vector<1x2x8x128xf32> to vector<2x8x128xf32>
    %45 = vector.shape_cast %42 : vector<2x8x128xf32> to vector<1x2x8x128xf32>
    tpu.vector_store %arg8[%c0_36, %c0_37, %c0_38, %c0_39], %45 {strides = array<i32>} : memref<1x2x8x128xf32, #tpu.memory_space<vmem>>, vector<1x2x8x128xf32>,
    %c0_40 = arith.constant 0 : index
    %c1 = arith.constant 1 : index
    %c0_41 = arith.constant 0 : index
    %c0_42 = arith.constant 0 : index
    %46 = vector.load %arg3[%c0_40, %c1, %c0_41, %c0_42] : memref<1x4x2x128xf32, #tpu.memory_space<vmem>>, vector<1x1x2x128xf32>
    %47 = vector.shape_cast %46 : vector<1x1x2x128xf32> to vector<2x128xf32>
    %48 = vector.shape_cast %47 : vector<2x128xf32> to vector<2x1x128xf32>
    %c0_43 = arith.constant 0 : index
    %c1_44 = arith.constant 1 : index
    %c0_45 = arith.constant 0 : index
    %c0_46 = arith.constant 0 : index
    %49 = vector.load %arg4[%c0_43, %c1_44, %c0_45, %c0_46] : memref<1x4x2x128xf32, #tpu.memory_space<vmem>>, vector<1x1x2x128xf32>
    %50 = vector.shape_cast %49 : vector<1x1x2x128xf32> to vector<2x128xf32>
    %51 = vector.shape_cast %50 : vector<2x128xf32> to vector<2x1x128xf32>
    %c0_47 = arith.constant 0 : index
    %c1_48 = arith.constant 1 : index
    %c0_49 = arith.constant 0 : index
    %c0_50 = arith.constant 0 : index
    %52 = vector.load %arg5[%c0_47, %c1_48, %c0_49, %c0_50] : memref<1x4x8x128xf32, #tpu.memory_space<vmem>>, vector<1x1x8x128xf32>
    %53 = vector.shape_cast %52 : vector<1x1x8x128xf32> to vector<8x128xf32>
    %54 = vector.shape_cast %53 : vector<8x128xf32> to vector<1x8x128xf32>
    %c0_51 = arith.constant 0 : index
    %c1_52 = arith.constant 1 : index
    %c0_53 = arith.constant 0 : index
    %c0_54 = arith.constant 0 : index
    %55 = vector.load %arg6[%c0_51, %c1_52, %c0_53, %c0_54] : memref<1x4x8x128xf32, #tpu.memory_space<vmem>>, vector<1x1x8x128xf32>
    %56 = vector.shape_cast %55 : vector<1x1x8x128xf32> to vector<8x128xf32>
    %57 = vector.shape_cast %56 : vector<8x128xf32> to vector<1x8x128xf32>
    %c0_55 = arith.constant 0 : index
    %c0_56 = arith.constant 0 : index
    %c0_57 = arith.constant 0 : index
    %c0_58 = arith.constant 0 : index
    %58 = vector.load %arg7[%c0_55, %c0_56, %c0_57, %c0_58] : memref<1x2x8x128xf32, #tpu.memory_space<vmem>>, vector<1x2x8x128xf32>
    %59 = vector.shape_cast %58 : vector<1x2x8x128xf32> to vector<2x8x128xf32>
    %60 = vector.broadcast %48 : vector<2x1x128xf32> to vector<2x8x128xf32>
    %61 = vector.broadcast %54 : vector<1x8x128xf32> to vector<2x8x128xf32>
    %62 = arith.mulf %60, %61 : vector<2x8x128xf32>
    %63 = vector.broadcast %51 : vector<2x1x128xf32> to vector<2x8x128xf32>
    %64 = vector.broadcast %57 : vector<1x8x128xf32> to vector<2x8x128xf32>
    %65 = arith.mulf %63, %64 : vector<2x8x128xf32>
    %66 = arith.subf %62, %65 : vector<2x8x128xf32>
    %67 = arith.addf %59, %66 : vector<2x8x128xf32>
    %c0_59 = arith.constant 0 : index
    %c0_60 = arith.constant 0 : index
    %c0_61 = arith.constant 0 : index
    %c0_62 = arith.constant 0 : index
    %68 = vector.load %arg7[%c0_59, %c0_60, %c0_61, %c0_62] : memref<1x2x8x128xf32, #tpu.memory_space<vmem>>, vector<1x2x8x128xf32>
    %69 = vector.shape_cast %68 : vector<1x2x8x128xf32> to vector<2x8x128xf32>
    %70 = vector.shape_cast %67 : vector<2x8x128xf32> to vector<1x2x8x128xf32>
    tpu.vector_store %arg7[%c0_59, %c0_60, %c0_61, %c0_62], %70 {strides = array<i32>} : memref<1x2x8x128xf32, #tpu.memory_space<vmem>>, vector<1x2x8x128xf32>,
    %c0_63 = arith.constant 0 : index
    %c0_64 = arith.constant 0 : index
    %c0_65 = arith.constant 0 : index
    %c0_66 = arith.constant 0 : index
    %71 = vector.load %arg8[%c0_63, %c0_64, %c0_65, %c0_66] : memref<1x2x8x128xf32, #tpu.memory_space<vmem>>, vector<1x2x8x128xf32>
    %72 = vector.shape_cast %71 : vector<1x2x8x128xf32> to vector<2x8x128xf32>
    %73 = vector.broadcast %48 : vector<2x1x128xf32> to vector<2x8x128xf32>
    %74 = vector.broadcast %57 : vector<1x8x128xf32> to vector<2x8x128xf32>
    %75 = arith.mulf %73, %74 : vector<2x8x128xf32>
    %76 = vector.broadcast %51 : vector<2x1x128xf32> to vector<2x8x128xf32>
    %77 = vector.broadcast %54 : vector<1x8x128xf32> to vector<2x8x128xf32>
    %78 = arith.mulf %76, %77 : vector<2x8x128xf32>
    %79 = arith.addf %75, %78 : vector<2x8x128xf32>
    %80 = arith.addf %72, %79 : vector<2x8x128xf32>
    %c0_67 = arith.constant 0 : index
    %c0_68 = arith.constant 0 : index
    %c0_69 = arith.constant 0 : index
    %c0_70 = arith.constant 0 : index
    %81 = vector.load %arg8[%c0_67, %c0_68, %c0_69, %c0_70] : memref<1x2x8x128xf32, #tpu.memory_space<vmem>>, vector<1x2x8x128xf32>
    %82 = vector.shape_cast %81 : vector<1x2x8x128xf32> to vector<2x8x128xf32>
    %83 = vector.shape_cast %80 : vector<2x8x128xf32> to vector<1x2x8x128xf32>
    tpu.vector_store %arg8[%c0_67, %c0_68, %c0_69, %c0_70], %83 {strides = array<i32>} : memref<1x2x8x128xf32, #tpu.memory_space<vmem>>, vector<1x2x8x128xf32>,
    %c0_71 = arith.constant 0 : index
    %c2 = arith.constant 2 : index
    %c0_72 = arith.constant 0 : index
    %c0_73 = arith.constant 0 : index
    %84 = vector.load %arg3[%c0_71, %c2, %c0_72, %c0_73] : memref<1x4x2x128xf32, #tpu.memory_space<vmem>>, vector<1x1x2x128xf32>
    %85 = vector.shape_cast %84 : vector<1x1x2x128xf32> to vector<2x128xf32>
    %86 = vector.shape_cast %85 : vector<2x128xf32> to vector<2x1x128xf32>
    %c0_74 = arith.constant 0 : index
    %c2_75 = arith.constant 2 : index
    %c0_76 = arith.constant 0 : index
    %c0_77 = arith.constant 0 : index
    %87 = vector.load %arg4[%c0_74, %c2_75, %c0_76, %c0_77] : memref<1x4x2x128xf32, #tpu.memory_space<vmem>>, vector<1x1x2x128xf32>
    %88 = vector.shape_cast %87 : vector<1x1x2x128xf32> to vector<2x128xf32>
    %89 = vector.shape_cast %88 : vector<2x128xf32> to vector<2x1x128xf32>
    %c0_78 = arith.constant 0 : index
    %c2_79 = arith.constant 2 : index
    %c0_80 = arith.constant 0 : index
    %c0_81 = arith.constant 0 : index
    %90 = vector.load %arg5[%c0_78, %c2_79, %c0_80, %c0_81] : memref<1x4x8x128xf32, #tpu.memory_space<vmem>>, vector<1x1x8x128xf32>
    %91 = vector.shape_cast %90 : vector<1x1x8x128xf32> to vector<8x128xf32>
    %92 = vector.shape_cast %91 : vector<8x128xf32> to vector<1x8x128xf32>
    %c0_82 = arith.constant 0 : index
    %c2_83 = arith.constant 2 : index
    %c0_84 = arith.constant 0 : index
    %c0_85 = arith.constant 0 : index
    %93 = vector.load %arg6[%c0_82, %c2_83, %c0_84, %c0_85] : memref<1x4x8x128xf32, #tpu.memory_space<vmem>>, vector<1x1x8x128xf32>
    %94 = vector.shape_cast %93 : vector<1x1x8x128xf32> to vector<8x128xf32>
    %95 = vector.shape_cast %94 : vector<8x128xf32> to vector<1x8x128xf32>
    %c0_86 = arith.constant 0 : index
    %c0_87 = arith.constant 0 : index
    %c0_88 = arith.constant 0 : index
    %c0_89 = arith.constant 0 : index
    %96 = vector.load %arg7[%c0_86, %c0_87, %c0_88, %c0_89] : memref<1x2x8x128xf32, #tpu.memory_space<vmem>>, vector<1x2x8x128xf32>
    %97 = vector.shape_cast %96 : vector<1x2x8x128xf32> to vector<2x8x128xf32>
    %98 = vector.broadcast %86 : vector<2x1x128xf32> to vector<2x8x128xf32>
    %99 = vector.broadcast %92 : vector<1x8x128xf32> to vector<2x8x128xf32>
    %100 = arith.mulf %98, %99 : vector<2x8x128xf32>
    %101 = vector.broadcast %89 : vector<2x1x128xf32> to vector<2x8x128xf32>
    %102 = vector.broadcast %95 : vector<1x8x128xf32> to vector<2x8x128xf32>
    %103 = arith.mulf %101, %102 : vector<2x8x128xf32>
    %104 = arith.subf %100, %103 : vector<2x8x128xf32>
    %105 = arith.addf %97, %104 : vector<2x8x128xf32>
    %c0_90 = arith.constant 0 : index
    %c0_91 = arith.constant 0 : index
    %c0_92 = arith.constant 0 : index
    %c0_93 = arith.constant 0 : index
    %106 = vector.load %arg7[%c0_90, %c0_91, %c0_92, %c0_93] : memref<1x2x8x128xf32, #tpu.memory_space<vmem>>, vector<1x2x8x128xf32>
    %107 = vector.shape_cast %106 : vector<1x2x8x128xf32> to vector<2x8x128xf32>
    %108 = vector.shape_cast %105 : vector<2x8x128xf32> to vector<1x2x8x128xf32>
    tpu.vector_store %arg7[%c0_90, %c0_91, %c0_92, %c0_93], %108 {strides = array<i32>} : memref<1x2x8x128xf32, #tpu.memory_space<vmem>>, vector<1x2x8x128xf32>,
    %c0_94 = arith.constant 0 : index
    %c0_95 = arith.constant 0 : index
    %c0_96 = arith.constant 0 : index
    %c0_97 = arith.constant 0 : index
    %109 = vector.load %arg8[%c0_94, %c0_95, %c0_96, %c0_97] : memref<1x2x8x128xf32, #tpu.memory_space<vmem>>, vector<1x2x8x128xf32>
    %110 = vector.shape_cast %109 : vector<1x2x8x128xf32> to vector<2x8x128xf32>
    %111 = vector.broadcast %86 : vector<2x1x128xf32> to vector<2x8x128xf32>
    %112 = vector.broadcast %95 : vector<1x8x128xf32> to vector<2x8x128xf32>
    %113 = arith.mulf %111, %112 : vector<2x8x128xf32>
    %114 = vector.broadcast %89 : vector<2x1x128xf32> to vector<2x8x128xf32>
    %115 = vector.broadcast %92 : vector<1x8x128xf32> to vector<2x8x128xf32>
    %116 = arith.mulf %114, %115 : vector<2x8x128xf32>
    %117 = arith.addf %113, %116 : vector<2x8x128xf32>
    %118 = arith.addf %110, %117 : vector<2x8x128xf32>
    %c0_98 = arith.constant 0 : index
    %c0_99 = arith.constant 0 : index
    %c0_100 = arith.constant 0 : index
    %c0_101 = arith.constant 0 : index
    %119 = vector.load %arg8[%c0_98, %c0_99, %c0_100, %c0_101] : memref<1x2x8x128xf32, #tpu.memory_space<vmem>>, vector<1x2x8x128xf32>
    %120 = vector.shape_cast %119 : vector<1x2x8x128xf32> to vector<2x8x128xf32>
    %121 = vector.shape_cast %118 : vector<2x8x128xf32> to vector<1x2x8x128xf32>
    tpu.vector_store %arg8[%c0_98, %c0_99, %c0_100, %c0_101], %121 {strides = array<i32>} : memref<1x2x8x128xf32, #tpu.memory_space<vmem>>, vector<1x2x8x128xf32>,
    %c0_102 = arith.constant 0 : index
    %c3 = arith.constant 3 : index
    %c0_103 = arith.constant 0 : index
    %c0_104 = arith.constant 0 : index
    %122 = vector.load %arg3[%c0_102, %c3, %c0_103, %c0_104] : memref<1x4x2x128xf32, #tpu.memory_space<vmem>>, vector<1x1x2x128xf32>
    %123 = vector.shape_cast %122 : vector<1x1x2x128xf32> to vector<2x128xf32>
    %124 = vector.shape_cast %123 : vector<2x128xf32> to vector<2x1x128xf32>
    %c0_105 = arith.constant 0 : index
    %c3_106 = arith.constant 3 : index
    %c0_107 = arith.constant 0 : index
    %c0_108 = arith.constant 0 : index
    %125 = vector.load %arg4[%c0_105, %c3_106, %c0_107, %c0_108] : memref<1x4x2x128xf32, #tpu.memory_space<vmem>>, vector<1x1x2x128xf32>
    %126 = vector.shape_cast %125 : vector<1x1x2x128xf32> to vector<2x128xf32>
    %127 = vector.shape_cast %126 : vector<2x128xf32> to vector<2x1x128xf32>
    %c0_109 = arith.constant 0 : index
    %c3_110 = arith.constant 3 : index
    %c0_111 = arith.constant 0 : index
    %c0_112 = arith.constant 0 : index
    %128 = vector.load %arg5[%c0_109, %c3_110, %c0_111, %c0_112] : memref<1x4x8x128xf32, #tpu.memory_space<vmem>>, vector<1x1x8x128xf32>
    %129 = vector.shape_cast %128 : vector<1x1x8x128xf32> to vector<8x128xf32>
    %130 = vector.shape_cast %129 : vector<8x128xf32> to vector<1x8x128xf32>
    %c0_113 = arith.constant 0 : index
    %c3_114 = arith.constant 3 : index
    %c0_115 = arith.constant 0 : index
    %c0_116 = arith.constant 0 : index
    %131 = vector.load %arg6[%c0_113, %c3_114, %c0_115, %c0_116] : memref<1x4x8x128xf32, #tpu.memory_space<vmem>>, vector<1x1x8x128xf32>
    %132 = vector.shape_cast %131 : vector<1x1x8x128xf32> to vector<8x128xf32>
    %133 = vector.shape_cast %132 : vector<8x128xf32> to vector<1x8x128xf32>
    %c0_117 = arith.constant 0 : index
    %c0_118 = arith.constant 0 : index
    %c0_119 = arith.constant 0 : index
    %c0_120 = arith.constant 0 : index
    %134 = vector.load %arg7[%c0_117, %c0_118, %c0_119, %c0_120] : memref<1x2x8x128xf32, #tpu.memory_space<vmem>>, vector<1x2x8x128xf32>
    %135 = vector.shape_cast %134 : vector<1x2x8x128xf32> to vector<2x8x128xf32>
    %136 = vector.broadcast %124 : vector<2x1x128xf32> to vector<2x8x128xf32>
    %137 = vector.broadcast %130 : vector<1x8x128xf32> to vector<2x8x128xf32>
    %138 = arith.mulf %136, %137 : vector<2x8x128xf32>
    %139 = vector.broadcast %127 : vector<2x1x128xf32> to vector<2x8x128xf32>
    %140 = vector.broadcast %133 : vector<1x8x128xf32> to vector<2x8x128xf32>
    %141 = arith.mulf %139, %140 : vector<2x8x128xf32>
    %142 = arith.subf %138, %141 : vector<2x8x128xf32>
    %143 = arith.addf %135, %142 : vector<2x8x128xf32>
    %c0_121 = arith.constant 0 : index
    %c0_122 = arith.constant 0 : index
    %c0_123 = arith.constant 0 : index
    %c0_124 = arith.constant 0 : index
    %144 = vector.load %arg7[%c0_121, %c0_122, %c0_123, %c0_124] : memref<1x2x8x128xf32, #tpu.memory_space<vmem>>, vector<1x2x8x128xf32>
    %145 = vector.shape_cast %144 : vector<1x2x8x128xf32> to vector<2x8x128xf32>
    %146 = vector.shape_cast %143 : vector<2x8x128xf32> to vector<1x2x8x128xf32>
    tpu.vector_store %arg7[%c0_121, %c0_122, %c0_123, %c0_124], %146 {strides = array<i32>} : memref<1x2x8x128xf32, #tpu.memory_space<vmem>>, vector<1x2x8x128xf32>,
    %c0_125 = arith.constant 0 : index
    %c0_126 = arith.constant 0 : index
    %c0_127 = arith.constant 0 : index
    %c0_128 = arith.constant 0 : index
    %147 = vector.load %arg8[%c0_125, %c0_126, %c0_127, %c0_128] : memref<1x2x8x128xf32, #tpu.memory_space<vmem>>, vector<1x2x8x128xf32>
    %148 = vector.shape_cast %147 : vector<1x2x8x128xf32> to vector<2x8x128xf32>
    %149 = vector.broadcast %124 : vector<2x1x128xf32> to vector<2x8x128xf32>
    %150 = vector.broadcast %133 : vector<1x8x128xf32> to vector<2x8x128xf32>
    %151 = arith.mulf %149, %150 : vector<2x8x128xf32>
    %152 = vector.broadcast %127 : vector<2x1x128xf32> to vector<2x8x128xf32>
    %153 = vector.broadcast %130 : vector<1x8x128xf32> to vector<2x8x128xf32>
    %154 = arith.mulf %152, %153 : vector<2x8x128xf32>
    %155 = arith.addf %151, %154 : vector<2x8x128xf32>
    %156 = arith.addf %148, %155 : vector<2x8x128xf32>
    %c0_129 = arith.constant 0 : index
    %c0_130 = arith.constant 0 : index
    %c0_131 = arith.constant 0 : index
    %c0_132 = arith.constant 0 : index
    %157 = vector.load %arg8[%c0_129, %c0_130, %c0_131, %c0_132] : memref<1x2x8x128xf32, #tpu.memory_space<vmem>>, vector<1x2x8x128xf32>
    %158 = vector.shape_cast %157 : vector<1x2x8x128xf32> to vector<2x8x128xf32>
    %159 = vector.shape_cast %156 : vector<2x8x128xf32> to vector<1x2x8x128xf32>
    tpu.vector_store %arg8[%c0_129, %c0_130, %c0_131, %c0_132], %159 {strides = array<i32>} : memref<1x2x8x128xf32, #tpu.memory_space<vmem>>, vector<1x2x8x128xf32>,
    return
  }
  func.func @transform_0(%arg0: i32, %arg1: i32, %arg2: i32) -> (i32, i32, i32, i32) {
    %c0_i32 = arith.constant 0 : i32
    %c0_i32_0 = arith.constant 0 : i32
    return %arg0, %c0_i32, %arg2, %arg1 : i32, i32, i32, i32
  }
  func.func @transform_1(%arg0: i32, %arg1: i32, %arg2: i32) -> (i32, i32, i32, i32) {
    %c0_i32 = arith.constant 0 : i32
    %c0_i32_0 = arith.constant 0 : i32
    return %arg0, %c0_i32, %arg2, %arg1 : i32, i32, i32, i32
  }
  func.func @transform_2(%arg0: i32, %arg1: i32, %arg2: i32) -> (i32, i32, i32, i32) {
    %c0_i32 = arith.constant 0 : i32
    %c0_i32_0 = arith.constant 0 : i32
    %c0_i32_1 = arith.constant 0 : i32
    return %arg0, %c0_i32, %c0_i32_0, %arg1 : i32, i32, i32, i32
  }
  func.func @transform_3(%arg0: i32, %arg1: i32, %arg2: i32) -> (i32, i32, i32, i32) {
    %c0_i32 = arith.constant 0 : i32
    %c0_i32_0 = arith.constant 0 : i32
    %c0_i32_1 = arith.constant 0 : i32
    return %arg0, %c0_i32, %c0_i32_0, %arg1 : i32, i32, i32, i32
  }
  func.func @transform_4(%arg0: i32, %arg1: i32, %arg2: i32) -> (i32, i32, i32, i32) {
    %c0_i32 = arith.constant 0 : i32
    %c0_i32_0 = arith.constant 0 : i32
    return %arg0, %arg2, %c0_i32, %arg1 : i32, i32, i32, i32
  }
  func.func @transform_5(%arg0: i32, %arg1: i32, %arg2: i32) -> (i32, i32, i32, i32) {
    %c0_i32 = arith.constant 0 : i32
    %c0_i32_0 = arith.constant 0 : i32
    return %arg0, %arg2, %c0_i32, %arg1 : i32, i32, i32, i32
  }
}

</mosaic_0001>

<llo_original>
// kernel: tpu_custom_call.1
$region0: #{tpu_custom_call.1}
  #allocation0 [shape = 'u32[]', space=smem, size = 0x4, offset = 0x4, fixed_abs, tag = 'smem constant byte address 0x4 - core index']
  #allocation1 [shape = 'u32[144,128]{1,0:T(1,128)}', space=vmem, size = 0x12000, scoped, tag = 'internal scratch']
  %s0 = inlined_call_operand.hbm [shape: f32[2,4,2,128], index: 0, kind: input, shape index: {}]
  %s1 = inlined_call_operand.hbm [shape: f32[2,4,2,128], index: 1, kind: input, shape index: {}]
  %s2 = inlined_call_operand.hbm [shape: f32[2,4,8,128], index: 2, kind: input, shape index: {}]
  %s3 = inlined_call_operand.hbm [shape: f32[2,4,8,128], index: 3, kind: input, shape index: {}]
  %s4 = inlined_call_operand.hbm [shape: f32[2,2,8,128], index: 4, kind: output, shape index: {0}]
  %s5 = inlined_call_operand.hbm [shape: f32[2,2,8,128], index: 5, kind: output, shape index: {1}]
  %6 = xla_tuple %s4, %s5
  %s7 = sld [smem:[#allocation0]]
  $region73: #{tpu_custom_call.1} parent=0
    _
  %s9 = ssub.s32 1, %s7
  %s10 = scalar_select 0, %s9, %s7
  $region1: #{tpu_custom_call.1} parent=0
    #allocation2 [shape = 'u8[8192]{0}', space=vmem, size = 0x2000, scoped, tag = 'input window, operand 0']
    #allocation3 [shape = 's32[2]{0}', space=sflag, size = 0x8, scoped, tag = 'scoped memory for tpu_custom_call.1']
    #allocation4 [shape = 's32[2]{0}', space=sflag, size = 0x8, scoped, tag = 'scoped memory for tpu_custom_call.1']
    #allocation5 [shape = 'u8[8192]{0}', space=vmem, size = 0x2000, scoped, tag = 'input window, operand 1']
    #allocation6 [shape = 's32[2]{0}', space=sflag, size = 0x8, scoped, tag = 'scoped memory for tpu_custom_call.1']
    #allocation7 [shape = 'u8[32768]{0}', space=vmem, size = 0x8000, scoped, tag = 'input window, operand 2']
    #allocation8 [shape = 'u8[32768]{0}', space=vmem, size = 0x8000, scoped, tag = 'input window, operand 3']
    #allocation9 [shape = 's32[2]{0}', space=sflag, size = 0x8, scoped, tag = 'scoped memory for tpu_custom_call.1']
    #allocation10 [shape = 'u8[16384]{0}', space=vmem, size = 0x4000, scoped, tag = 'output window, operand 0']
    #allocation11 [shape = 'u8[16384]{0}', space=vmem, size = 0x4000, scoped, tag = 'output window, operand 1']
    #allocation12 [shape = 's32[2]{0}', space=sflag, size = 0x8, scoped, tag = 'scoped memory for tpu_custom_call.1']
    %11 = vsyncpa [#allocation3], 0
    %s12 = scalar_lea.sflag [#allocation3], 1
    %13 = vsyncpa %s12, 0
    %14 = vsyncpa [#allocation6], 0
    %s15 = scalar_lea.sflag [#allocation6], 1
    %16 = vsyncpa %s15, 0
    %17 = vsyncpa [#allocation9], 0
    %s18 = scalar_lea.sflag [#allocation9], 1
    %19 = vsyncpa %s18, 0
    %20 = vsyncpa [#allocation4], 0
    %s21 = scalar_lea.sflag [#allocation4], 1
    %22 = vsyncpa %s21, 0
    %23 = vsyncpa [#allocation12], 0
    %s24 = scalar_lea.sflag [#allocation12], 1
    %25 = vsyncpa %s24, 0
    loop: start=0, step=1, limit=4
    $region2: #{tpu_custom_call.1} parent=1 // loop_pre_header
      _
    $region3: #{tpu_custom_call.1} parent=1 // loop_header
      %s27 = sphi 0, %s31
      %p28 = scmp.ge.s32.totalorder %s27, 4
      %s34 = sphi 0, %s53
      %s35 = sphi 0, %s49
      %s36 = sphi 0, %s45
      %s37 = sphi 0, %s34
      %s38 = sphi 0, %s35
      %s39 = sphi 0, %s36
      %s40 = sphi 0, %s37
      %s41 = sphi 0, %s38
      %s42 = sphi 0, %s39
      %s60 = sphi 0, %s62
      %s63 = sphi 0, %s60
      %s64 = sphi 0, %s63
      %s80 = sphi 0, %s64
      %s90 = sphi 0, %s92
      %s93 = sphi 0, %s90
      %s94 = sphi 0, %s93
      %s110 = sphi 0, %s94
      %s118 = sphi 0, %s120
      %s121 = sphi 0, %s118
      %s122 = sphi 0, %s121
      %s138 = sphi 0, %s122
      %s146 = sphi 0, %s148
      %s149 = sphi 0, %s146
      %s150 = sphi 0, %s149
      %s166 = sphi 0, %s150
      %s176 = sphi 0, %s178
      %s179 = sphi 0, %s176
      %s180 = sphi 0, %s179
      %s196 = sphi 0, %s180
      %s206 = sphi 0, %s208
      %s209 = sphi 0, %s206
      %s210 = sphi 0, %s209
      %s226 = sphi 0, %s210
    $region4: #{tpu_custom_call.1} parent=1 // loop_header_branch
      %30 = sbr.rel (%p28) target = $region8
    $region5: #{tpu_custom_call.1} parent=1 // loop_body
      %s32 = ssub.s32 %s27, 1
      %s33 = ssub.s32 %s27, 2
      %s43 = sadd.s32 1, %s36
      %p44 = scmp.ge.s32.totalorder %s43, 1
      %s45 = scalar_select %p44, 0, %s43
      %s46 = sadd.s32 1, %s35
      %s47 = scalar_select %p44, %s46, %s35
      %p48 = scmp.ge.s32.totalorder %s47, 1
      %s49 = scalar_select %p48, 0, %s47
      %s50 = sadd.s32 1, %s34
      %s51 = scalar_select %p48, %s50, %s34
      %p52 = scmp.ge.s32.totalorder %s51, 2
      %s53 = scalar_select %p52, 0, %s51
      %s54 = ssub.s32 %s34, %s53
      %s55 = ssub.s32 %s36, %s45
      %s56 = sor.u32 %s54, %s55
      %s57 = ssub.s32 %s35, %s49
      %s58 = sor.u32 %s56, %s57
      %p59 = scmp.eq.s32.totalorder %s58, 0
      %s61 = sadd.s32 %s60, 1
      %s62 = scalar_select %p59, %s60, %s61
      %p65 = pneg %p59
      %p66 = scmp.eq.s32.totalorder %s27, 1
      %p67 = por %p65, %p66
      %p68 = scmp.ne.s32.totalorder %s60, %s63
      %p69 = scmp.eq.s32.totalorder %s27, 0
      %p70 = por %p68, %p69
      %p71 = scmp.ne.s32.totalorder %s60, %s63
      %p72 = scmp.eq.s32.totalorder %s32, 1
      %p73 = por %p71, %p72
      %p74 = scmp.ne.s32.totalorder %s63, %s64
      %p75 = scmp.eq.s32.totalorder %s32, 0
      %p76 = por %p74, %p75
      %p77 = scmp.ne.s32.totalorder %s63, %s64
      %p78 = scmp.eq.s32.totalorder %s33, 1
      %p79 = por %p77, %p78
      %p81 = scmp.ne.s32.totalorder %s64, %s80
      %p82 = scmp.eq.s32.totalorder %s33, 0
      %p83 = por %p81, %p82
      %s84 = ssub.s32 %s34, %s53
      %s85 = ssub.s32 %s36, %s45
      %s86 = sor.u32 %s84, %s85
      %s87 = ssub.s32 %s35, %s49
      %s88 = sor.u32 %s86, %s87
      %p89 = scmp.eq.s32.totalorder %s88, 0
      %s91 = sadd.s32 %s90, 1
      %s92 = scalar_select %p89, %s90, %s91
      %p95 = pneg %p89
      %p96 = scmp.eq.s32.totalorder %s27, 1
      %p97 = por %p95, %p96
      %p98 = scmp.ne.s32.totalorder %s90, %s93
      %p99 = scmp.eq.s32.totalorder %s27, 0
      %p100 = por %p98, %p99
      %p101 = scmp.ne.s32.totalorder %s90, %s93
      %p102 = scmp.eq.s32.totalorder %s32, 1
      %p103 = por %p101, %p102
      %p104 = scmp.ne.s32.totalorder %s93, %s94
      %p105 = scmp.eq.s32.totalorder %s32, 0
      %p106 = por %p104, %p105
      %p107 = scmp.ne.s32.totalorder %s93, %s94
      %p108 = scmp.eq.s32.totalorder %s33, 1
      %p109 = por %p107, %p108
      %p111 = scmp.ne.s32.totalorder %s94, %s110
      %p112 = scmp.eq.s32.totalorder %s33, 0
      %p113 = por %p111, %p112
      %s114 = ssub.s32 %s34, %s53
      %s115 = ssub.s32 %s35, %s49
      %s116 = sor.u32 %s114, %s115
      %p117 = scmp.eq.s32.totalorder %s116, 0
      %s119 = sadd.s32 %s118, 1
      %s120 = scalar_select %p117, %s118, %s119
      %p123 = pneg %p117
      %p124 = scmp.eq.s32.totalorder %s27, 1
      %p125 = por %p123, %p124
      %p126 = scmp.ne.s32.totalorder %s118, %s121
      %p127 = scmp.eq.s32.totalorder %s27, 0
      %p128 = por %p126, %p127
      %p129 = scmp.ne.s32.totalorder %s118, %s121
      %p130 = scmp.eq.s32.totalorder %s32, 1
      %p131 = por %p129, %p130
      %p132 = scmp.ne.s32.totalorder %s121, %s122
      %p133 = scmp.eq.s32.totalorder %s32, 0
      %p134 = por %p132, %p133
      %p135 = scmp.ne.s32.totalorder %s121, %s122
      %p136 = scmp.eq.s32.totalorder %s33, 1
      %p137 = por %p135, %p136
      %p139 = scmp.ne.s32.totalorder %s122, %s138
      %p140 = scmp.eq.s32.totalorder %s33, 0
      %p141 = por %p139, %p140
      %s142 = ssub.s32 %s34, %s53
      %s143 = ssub.s32 %s35, %s49
      %s144 = sor.u32 %s142, %s143
      %p145 = scmp.eq.s32.totalorder %s144, 0
      %s147 = sadd.s32 %s146, 1
      %s148 = scalar_select %p145, %s146, %s147
      %p151 = pneg %p145
      %p152 = scmp.eq.s32.totalorder %s27, 1
      %p153 = por %p151, %p152
      %p154 = scmp.ne.s32.totalorder %s146, %s149
      %p155 = scmp.eq.s32.totalorder %s27, 0
      %p156 = por %p154, %p155
      %p157 = scmp.ne.s32.totalorder %s146, %s149
      %p158 = scmp.eq.s32.totalorder %s32, 1
      %p159 = por %p157, %p158
      %p160 = scmp.ne.s32.totalorder %s149, %s150
      %p161 = scmp.eq.s32.totalorder %s32, 0
      %p162 = por %p160, %p161
      %p163 = scmp.ne.s32.totalorder %s149, %s150
      %p164 = scmp.eq.s32.totalorder %s33, 1
      %p165 = por %p163, %p164
      %p167 = scmp.ne.s32.totalorder %s150, %s166
      %p168 = scmp.eq.s32.totalorder %s33, 0
      %p169 = por %p167, %p168
      %s170 = ssub.s32 %s34, %s53
      %s171 = ssub.s32 %s36, %s45
      %s172 = sor.u32 %s170, %s171
      %s173 = ssub.s32 %s35, %s49
      %s174 = sor.u32 %s172, %s173
      %p175 = scmp.eq.s32.totalorder %s174, 0
      %s177 = sadd.s32 %s176, 1
      %s178 = scalar_select %p175, %s176, %s177
      %p181 = pneg %p175
      %p182 = scmp.eq.s32.totalorder %s27, 1
      %p183 = por %p181, %p182
      %p184 = scmp.ne.s32.totalorder %s176, %s179
      %p185 = scmp.eq.s32.totalorder %s27, 0
      %p186 = por %p184, %p185
      %p187 = scmp.ne.s32.totalorder %s176, %s179
      %p188 = scmp.eq.s32.totalorder %s32, 1
      %p189 = por %p187, %p188
      %p190 = scmp.ne.s32.totalorder %s179, %s180
      %p191 = scmp.eq.s32.totalorder %s32, 0
      %p192 = por %p190, %p191
      %p193 = scmp.ne.s32.totalorder %s179, %s180
      %p194 = scmp.eq.s32.totalorder %s33, 1
      %p195 = por %p193, %p194
      %p197 = scmp.ne.s32.totalorder %s180, %s196
      %p198 = scmp.eq.s32.totalorder %s33, 0
      %p199 = por %p197, %p198
      %s200 = ssub.s32 %s34, %s53
      %s201 = ssub.s32 %s36, %s45
      %s202 = sor.u32 %s200, %s201
      %s203 = ssub.s32 %s35, %s49
      %s204 = sor.u32 %s202, %s203
      %p205 = scmp.eq.s32.totalorder %s204, 0
      %s207 = sadd.s32 %s206, 1
      %s208 = scalar_select %p205, %s206, %s207
      %p211 = pneg %p205
      %p212 = scmp.eq.s32.totalorder %s27, 1
      %p213 = por %p211, %p212
      %p214 = scmp.ne.s32.totalorder %s206, %s209
      %p215 = scmp.eq.s32.totalorder %s27, 0
      %p216 = por %p214, %p215
      %p217 = scmp.ne.s32.totalorder %s206, %s209
      %p218 = scmp.eq.s32.totalorder %s32, 1
      %p219 = por %p217, %p218
      %p220 = scmp.ne.s32.totalorder %s209, %s210
      %p221 = scmp.eq.s32.totalorder %s32, 0
      %p222 = por %p220, %p221
      %p223 = scmp.ne.s32.totalorder %s209, %s210
      %p224 = scmp.eq.s32.totalorder %s33, 1
      %p225 = por %p223, %p224
      %p227 = scmp.ne.s32.totalorder %s210, %s226
      %p228 = scmp.eq.s32.totalorder %s33, 0
      %p229 = por %p227, %p228
      %p230 = scmp.le.s32.totalorder 1, %s27
      %p231 = scmp.lt.s32.totalorder %s27, 3
      %p232 = pnand %p230, %p231
      %p233 = pneg %p232
      // Predicated region
      $region9: #{tpu_custom_call.1} parent=5 // pred_check
        _
      $region10: #{tpu_custom_call.1} parent=5 // pred_check_branch
        %235 = sbr.rel (%p232) target = $region12
      $region11: #{tpu_custom_call.1} parent=5 // pred_region
        %s236 = ssub.s32 %s27, 1
      $region12: #{tpu_custom_call.1} parent=5 // pred_fallthru
        _
      %p237 = scmp.lt.s32.totalorder %s27, 2
      // Predicated region
      $region13: #{tpu_custom_call.1} parent=5 // pred_check
        %p238 = pneg %p237
      $region14: #{tpu_custom_call.1} parent=5 // pred_check_branch
        %240 = sbr.rel (%p238) target = $region16
      $region15: #{tpu_custom_call.1} parent=5 // pred_region
        // Predicated region
        $region17: #{tpu_custom_call.1} parent=15 // pred_check
          %p241 = pneg %p70
        $region18: #{tpu_custom_call.1} parent=15 // pred_check_branch
          %243 = sbr.rel (%p241) target = $region20
        $region19: #{tpu_custom_call.1} parent=15 // pred_region
          %s244 = sand.u32 %s60, 1
          %s245 = scalar_lea.sflag [#allocation3], %s244
          %s246 = sand.u32 %s60, 1
          %s247 = smul.addr %s246, 8
          %s248 = scalar_lea.vmem [#allocation2], %s247
          %s250 = ssub.s32 128, 128
          %251 = vsyncadd %s245, %s250
          %s252 = sadd.s32 %s35, %s36
          %s253 = smul.addr %s34, 4
          %s254 = sadd.s32 %s252, %s253
          %s255 = smul.addr %s254, 32
          %s256 = scalar_lea.hbm %s0, %s255
          %s257 = sshll.u32 %s248, 4
          %s258 = int_to_ptr.vmem [resolvable:$true] %s257
          %263 = dma.hbm_to_vmem [thread:$0]  %s256, 128, %s258, %s245, 32, 32, 2
        $region20: #{tpu_custom_call.1} parent=15 // pred_fallthru
          _
        // Predicated region
        $region21: #{tpu_custom_call.1} parent=15 // pred_check
          %p264 = pneg %p100
        $region22: #{tpu_custom_call.1} parent=15 // pred_check_branch
          %266 = sbr.rel (%p264) target = $region24
        $region23: #{tpu_custom_call.1} parent=15 // pred_region
          %s267 = sand.u32 %s27, 1
          %s268 = scalar_lea.sflag [#allocation6], %s267
          %s269 = sand.u32 %s90, 1
          %s270 = smul.addr %s269, 8
          %s271 = scalar_lea.vmem [#allocation5], %s270
          %s273 = ssub.s32 128, 128
          %274 = vsyncadd %s268, %s273
          %s275 = sadd.s32 %s35, %s36
          %s276 = smul.addr %s34, 4
          %s277 = sadd.s32 %s275, %s276
          %s278 = smul.addr %s277, 32
          %s279 = scalar_lea.hbm %s1, %s278
          %s280 = sshll.u32 %s271, 4
          %s281 = int_to_ptr.vmem [resolvable:$true] %s280
          %286 = dma.hbm_to_vmem [thread:$0]  %s279, 128, %s281, %s268, 32, 32, 2
        $region24: #{tpu_custom_call.1} parent=15 // pred_fallthru
          _
        // Predicated region
        $region25: #{tpu_custom_call.1} parent=15 // pred_check
          %p287 = pneg %p128
        $region26: #{tpu_custom_call.1} parent=15 // pred_check_branch
          %289 = sbr.rel (%p287) target = $region28
        $region27: #{tpu_custom_call.1} parent=15 // pred_region
          %s290 = sand.u32 %s27, 1
          %s291 = scalar_lea.sflag [#allocation6], %s290
          %s292 = sand.u32 %s118, 1
          %s293 = smul.addr %s292, 32
          %s294 = scalar_lea.vmem [#allocation7], %s293
          %s296 = ssub.s32 512, 512
          %297 = vsyncadd %s291, %s296
          %s298 = smul.addr %s34, 4
          %s299 = sadd.s32 %s35, %s298
          %s300 = smul.addr %s299, 128
          %s301 = scalar_lea.hbm %s2, %s300
          %s302 = sshll.u32 %s294, 4
          %s303 = int_to_ptr.vmem [resolvable:$true] %s302
          %308 = dma.hbm_to_vmem [thread:$0]  %s301, 512, %s303, %s291, 128, 128, 8
        $region28: #{tpu_custom_call.1} parent=15 // pred_fallthru
          _
        // Predicated region
        $region29: #{tpu_custom_call.1} parent=15 // pred_check
          %p309 = pneg %p156
        $region30: #{tpu_custom_call.1} parent=15 // pred_check_branch
          %311 = sbr.rel (%p309) target = $region32
        $region31: #{tpu_custom_call.1} parent=15 // pred_region
          %s312 = sand.u32 %s146, 1
          %s313 = scalar_lea.sflag [#allocation9], %s312
          %s314 = sand.u32 %s146, 1
          %s315 = smul.addr %s314, 32
          %s316 = scalar_lea.vmem [#allocation8], %s315
          %s318 = ssub.s32 512, 512
          %319 = vsyncadd %s313, %s318
          %s320 = smul.addr %s34, 4
          %s321 = sadd.s32 %s35, %s320
          %s322 = smul.addr %s321, 128
          %s323 = scalar_lea.hbm %s3, %s322
          %s324 = sshll.u32 %s316, 4
          %s325 = int_to_ptr.vmem [resolvable:$true] %s324
          %330 = dma.hbm_to_vmem [thread:$0]  %s323, 512, %s325, %s313, 128, 128, 8
        $region32: #{tpu_custom_call.1} parent=15 // pred_fallthru
          _
      $region16: #{tpu_custom_call.1} parent=5 // pred_fallthru
        _
      %p331 = scmp.le.s32.totalorder 1, %s27
      %p332 = scmp.lt.s32.totalorder %s27, 3
      %p333 = pnand %p331, %p332
      %p334 = pneg %p333
      // Predicated region
      $region33: #{tpu_custom_call.1} parent=5 // pred_check
        _
      $region34: #{tpu_custom_call.1} parent=5 // pred_check_branch
        %336 = sbr.rel (%p333) target = $region36
      $region35: #{tpu_custom_call.1} parent=5 // pred_region
        %s337 = ssub.s32 %s27, 1
        %s338 = sand.u32 %s63, 1
        %s339 = scalar_lea.sflag [#allocation3], %s338
        %s340 = sand.u32 %s63, 1
        %s341 = smul.addr %s340, 8
        %s342 = scalar_lea.vmem [#allocation2], %s341
        // Predicated region
        $region37: #{tpu_custom_call.1} parent=35 // pred_check
          %p343 = pneg %p76
        $region38: #{tpu_custom_call.1} parent=35 // pred_check_branch
          %345 = sbr.rel (%p343) target = $region40
        $region39: #{tpu_custom_call.1} parent=35 // pred_region
          %346 = dma.done %s339, 128
        $region40: #{tpu_custom_call.1} parent=35 // pred_fallthru
          _
        %s347 = sand.u32 %s32, 1
        %s348 = scalar_lea.sflag [#allocation6], %s347
        %s349 = sand.u32 %s93, 1
        %s350 = smul.addr %s349, 8
        %s351 = scalar_lea.vmem [#allocation5], %s350
        // Predicated region
        $region41: #{tpu_custom_call.1} parent=35 // pred_check
          %p352 = pneg %p106
        $region42: #{tpu_custom_call.1} parent=35 // pred_check_branch
          %354 = sbr.rel (%p352) target = $region44
        $region43: #{tpu_custom_call.1} parent=35 // pred_region
          %355 = dma.done %s348, 128
        $region44: #{tpu_custom_call.1} parent=35 // pred_fallthru
          _
        %s356 = sand.u32 %s32, 1
        %s357 = scalar_lea.sflag [#allocation6], %s356
        %s358 = sand.u32 %s121, 1
        %s359 = smul.addr %s358, 32
        %s360 = scalar_lea.vmem [#allocation7], %s359
        // Predicated region
        $region45: #{tpu_custom_call.1} parent=35 // pred_check
          %p361 = pneg %p134
        $region46: #{tpu_custom_call.1} parent=35 // pred_check_branch
          %363 = sbr.rel (%p361) target = $region48
        $region47: #{tpu_custom_call.1} parent=35 // pred_region
          %364 = dma.done %s357, 512
        $region48: #{tpu_custom_call.1} parent=35 // pred_fallthru
          _
        %s365 = sand.u32 %s149, 1
        %s366 = scalar_lea.sflag [#allocation9], %s365
        %s367 = sand.u32 %s149, 1
        %s368 = smul.addr %s367, 32
        %s369 = scalar_lea.vmem [#allocation8], %s368
        // Predicated region
        $region49: #{tpu_custom_call.1} parent=35 // pred_check
          %p370 = pneg %p162
        $region50: #{tpu_custom_call.1} parent=35 // pred_check_branch
          %372 = sbr.rel (%p370) target = $region52
        $region51: #{tpu_custom_call.1} parent=35 // pred_region
          %373 = dma.done %s366, 512
        $region52: #{tpu_custom_call.1} parent=35 // pred_fallthru
          _
        %s374 = sand.u32 %s63, 1
        %s375 = scalar_lea.sflag [#allocation3], %s374
        %s376 = sand.u32 %s63, 1
        %s377 = smul.addr %s376, 8
        %s378 = scalar_lea.vmem [#allocation2], %s377
        %p379 = pneg %p76
        %p380 = pneg %p73
        %s381 = sand.u32 %s32, 1
        %s382 = scalar_lea.sflag [#allocation6], %s381
        %s383 = sand.u32 %s93, 1
        %s384 = smul.addr %s383, 8
        %s385 = scalar_lea.vmem [#allocation5], %s384
        %p386 = pneg %p106
        %p387 = pneg %p103
        %s388 = sand.u32 %s32, 1
        %s389 = scalar_lea.sflag [#allocation6], %s388
        %s390 = sand.u32 %s121, 1
        %s391 = smul.addr %s390, 32
        %s392 = scalar_lea.vmem [#allocation7], %s391
        %p393 = pneg %p134
        %p394 = pneg %p131
        %s395 = sand.u32 %s149, 1
        %s396 = scalar_lea.sflag [#allocation9], %s395
        %s397 = sand.u32 %s149, 1
        %s398 = smul.addr %s397, 32
        %s399 = scalar_lea.vmem [#allocation8], %s398
        %p400 = pneg %p162
        %p401 = pneg %p159
        %p402 = pneg %p192
        %p403 = pneg %p189
        %s404 = sand.u32 %s179, 1
        %s405 = scalar_lea.sflag [#allocation4], %s404
        %s406 = sand.u32 %s179, 1
        %s407 = smul.addr %s406, 16
        %s408 = scalar_lea.vmem [#allocation10], %s407
        %p409 = pneg %p222
        %p410 = pneg %p219
        %s411 = sand.u32 %s209, 1
        %s412 = scalar_lea.sflag [#allocation12], %s411
        %s413 = sand.u32 %s209, 1
        %s414 = smul.addr %s413, 16
        %s415 = scalar_lea.vmem [#allocation11], %s414
        %s416 = smul.u32 2, %s39
        %s417 = smul.u32 2, %s39
        %418 = vst [vmem:[%s408] sm:$0xff] 0.0
        %419 = vst [vmem:[%s408 + $0x8] sm:$0xff] 0.0
        %420 = vst [vmem:[%s415] sm:$0xff] 0.0
        %421 = vst [vmem:[%s415 + $0x8] sm:$0xff] 0.0
        %v422 = vld [vmem:[%s342] sm:$0x3]
        %v425 = vunpack.c.l.s4 1966171168
        %v426 = vunpack.c.0.s8 %v425
        %v427 = vlaneseq
        %v428 = vshrl.u32 %v427, 7
        %v429 = vsub.s32 %v426, %v428
        %v430 = vrot.slane %v422, %v429
        %v431 = vcombine.high %v430, %v430
        %v433 = vunpack.c.l.s4 1966171168
        %v434 = vunpack.c.0.s8 %v433
        %v435 = vlaneseq
        %v436 = vshrl.u32 %v435, 7
        %v437 = vsub.s32 %v434, %v436
        %v438 = vrot.slane %v430, %v437
        %v440 = vunpack.c.l.s4 1966171168
        %v441 = vunpack.c.0.s8 %v440
        %v442 = vlaneseq
        %v443 = vshrl.u32 %v442, 7
        %v444 = vsub.s32 %v441, %v443
        %v445 = vrot.slane %v431, %v444
        %v446 = vld [vmem:[%s351] sm:$0x3]
        %v449 = vunpack.c.l.s4 1966171168
        %v450 = vunpack.c.0.s8 %v449
        %v451 = vlaneseq
        %v452 = vshrl.u32 %v451, 7
        %v453 = vsub.s32 %v450, %v452
        %v454 = vrot.slane %v446, %v453
        %v455 = vcombine.high %v454, %v454
        %v457 = vunpack.c.l.s4 1966171168
        %v458 = vunpack.c.0.s8 %v457
        %v459 = vlaneseq
        %v460 = vshrl.u32 %v459, 7
        %v461 = vsub.s32 %v458, %v460
        %v462 = vrot.slane %v454, %v461
        %v464 = vunpack.c.l.s4 1966171168
        %v465 = vunpack.c.0.s8 %v464
        %v466 = vlaneseq
        %v467 = vshrl.u32 %v466, 7
        %v468 = vsub.s32 %v465, %v467
        %v469 = vrot.slane %v455, %v468
        %v470 = vld [vmem:[%s360] sm:$0xff]
        %v471 = vld [vmem:[%s369] sm:$0xff]
        %v472 = vld [vmem:[%s408] sm:$0xff]
        %v473 = vld [vmem:[%s408 + $0x8] sm:$0xff]
        %v474 = vlaneseq
        %v475 = vshrl.u32 %v474, 7
        %v476 = vsub.s32 0, %v475
        %v477 = vrot.slane %v438, %v476
        %v478 = vlaneseq
        %v479 = vshrl.u32 %v478, 7
        %v480 = vsub.s32 0, %v479
        %v481 = vrot.slane %v445, %v480
        %v484 = vmul.f32 %v477, %v470
        %v485 = vmul.f32 %v481, %v470
        %v486 = vlaneseq
        %v487 = vshrl.u32 %v486, 7
        %v488 = vsub.s32 0, %v487
        %v489 = vrot.slane %v462, %v488
        %v490 = vlaneseq
        %v491 = vshrl.u32 %v490, 7
        %v492 = vsub.s32 0, %v491
        %v493 = vrot.slane %v469, %v492
        %v496 = vmul.f32 %v489, %v471
        %v497 = vmul.f32 %v493, %v471
        %v498 = vsub.f32 %v484, %v496
        %v499 = vsub.f32 %v485, %v497
        %v500 = vadd.f32 %v472, %v498
        %v501 = vadd.f32 %v473, %v499
        %502 = vst [vmem:[%s408] sm:$0xff] %v500
        %503 = vst [vmem:[%s408 + $0x8] sm:$0xff] %v501
        %v504 = vld [vmem:[%s415] sm:$0xff]
        %v505 = vld [vmem:[%s415 + $0x8] sm:$0xff]
        %v506 = vmul.f32 %v477, %v471
        %v507 = vmul.f32 %v481, %v471
        %v508 = vmul.f32 %v489, %v470
        %v509 = vmul.f32 %v493, %v470
        %v510 = vadd.f32 %v506, %v508
        %v511 = vadd.f32 %v507, %v509
        %v512 = vadd.f32 %v504, %v510
        %v513 = vadd.f32 %v505, %v511
        %514 = vst [vmem:[%s415] sm:$0xff] %v512
        %515 = vst [vmem:[%s415 + $0x8] sm:$0xff] %v513
        %s516 = scalar_lea.vmem %s342, 2 [#allocation2]
        %v517 = vld [vmem:[%s516] sm:$0x3]
        %v520 = vunpack.c.l.s4 1966171168
        %v521 = vunpack.c.0.s8 %v520
        %v522 = vlaneseq
        %v523 = vshrl.u32 %v522, 7
        %v524 = vsub.s32 %v521, %v523
        %v525 = vrot.slane %v517, %v524
        %v526 = vcombine.high %v525, %v525
        %v528 = vunpack.c.l.s4 1966171168
        %v529 = vunpack.c.0.s8 %v528
        %v530 = vlaneseq
        %v531 = vshrl.u32 %v530, 7
        %v532 = vsub.s32 %v529, %v531
        %v533 = vrot.slane %v525, %v532
        %v535 = vunpack.c.l.s4 1966171168
        %v536 = vunpack.c.0.s8 %v535
        %v537 = vlaneseq
        %v538 = vshrl.u32 %v537, 7
        %v539 = vsub.s32 %v536, %v538
        %v540 = vrot.slane %v526, %v539
        %s541 = scalar_lea.vmem %s351, 2 [#allocation5]
        %v542 = vld [vmem:[%s541] sm:$0x3]
        %v545 = vunpack.c.l.s4 1966171168
        %v546 = vunpack.c.0.s8 %v545
        %v547 = vlaneseq
        %v548 = vshrl.u32 %v547, 7
        %v549 = vsub.s32 %v546, %v548
        %v550 = vrot.slane %v542, %v549
        %v551 = vcombine.high %v550, %v550
        %v553 = vunpack.c.l.s4 1966171168
        %v554 = vunpack.c.0.s8 %v553
        %v555 = vlaneseq
        %v556 = vshrl.u32 %v555, 7
        %v557 = vsub.s32 %v554, %v556
        %v558 = vrot.slane %v550, %v557
        %v560 = vunpack.c.l.s4 1966171168
        %v561 = vunpack.c.0.s8 %v560
        %v562 = vlaneseq
        %v563 = vshrl.u32 %v562, 7
        %v564 = vsub.s32 %v561, %v563
        %v565 = vrot.slane %v551, %v564
        %s566 = scalar_lea.vmem %s360, 8 [#allocation7]
        %v567 = vld [vmem:[%s566] sm:$0xff]
        %s568 = scalar_lea.vmem %s369, 8 [#allocation8]
        %v569 = vld [vmem:[%s568] sm:$0xff]
        %v570 = vld [vmem:[%s408] sm:$0xff]
        %v571 = vld [vmem:[%s408 + $0x8] sm:$0xff]
        %v572 = vlaneseq
        %v573 = vshrl.u32 %v572, 7
        %v574 = vsub.s32 0, %v573
        %v575 = vrot.slane %v533, %v574
        %v576 = vlaneseq
        %v577 = vshrl.u32 %v576, 7
        %v578 = vsub.s32 0, %v577
        %v579 = vrot.slane %v540, %v578
        %v582 = vmul.f32 %v575, %v567
        %v583 = vmul.f32 %v579, %v567
        %v584 = vlaneseq
        %v585 = vshrl.u32 %v584, 7
        %v586 = vsub.s32 0, %v585
        %v587 = vrot.slane %v558, %v586
        %v588 = vlaneseq
        %v589 = vshrl.u32 %v588, 7
        %v590 = vsub.s32 0, %v589
        %v591 = vrot.slane %v565, %v590
        %v594 = vmul.f32 %v587, %v569
        %v595 = vmul.f32 %v591, %v569
        %v596 = vsub.f32 %v582, %v594
        %v597 = vsub.f32 %v583, %v595
        %v598 = vadd.f32 %v570, %v596
        %v599 = vadd.f32 %v571, %v597
        %600 = vst [vmem:[%s408] sm:$0xff] %v598
        %601 = vst [vmem:[%s408 + $0x8] sm:$0xff] %v599
        %v602 = vld [vmem:[%s415] sm:$0xff]
        %v603 = vld [vmem:[%s415 + $0x8] sm:$0xff]
        %v604 = vmul.f32 %v575, %v569
        %v605 = vmul.f32 %v579, %v569
        %v606 = vmul.f32 %v587, %v567
        %v607 = vmul.f32 %v591, %v567
        %v608 = vadd.f32 %v604, %v606
        %v609 = vadd.f32 %v605, %v607
        %v610 = vadd.f32 %v602, %v608
        %v611 = vadd.f32 %v603, %v609
        %612 = vst [vmem:[%s415] sm:$0xff] %v610
        %613 = vst [vmem:[%s415 + $0x8] sm:$0xff] %v611
        %s614 = scalar_lea.vmem %s342, 4 [#allocation2]
        %v615 = vld [vmem:[%s614] sm:$0x3]
        %v618 = vunpack.c.l.s4 1966171168
        %v619 = vunpack.c.0.s8 %v618
        %v620 = vlaneseq
        %v621 = vshrl.u32 %v620, 7
        %v622 = vsub.s32 %v619, %v621
        %v623 = vrot.slane %v615, %v622
        %v624 = vcombine.high %v623, %v623
        %v626 = vunpack.c.l.s4 1966171168
        %v627 = vunpack.c.0.s8 %v626
        %v628 = vlaneseq
        %v629 = vshrl.u32 %v628, 7
        %v630 = vsub.s32 %v627, %v629
        %v631 = vrot.slane %v623, %v630
        %v633 = vunpack.c.l.s4 1966171168
        %v634 = vunpack.c.0.s8 %v633
        %v635 = vlaneseq
        %v636 = vshrl.u32 %v635, 7
        %v637 = vsub.s32 %v634, %v636
        %v638 = vrot.slane %v624, %v637
        %s639 = scalar_lea.vmem %s351, 4 [#allocation5]
        %v640 = vld [vmem:[%s639] sm:$0x3]
        %v643 = vunpack.c.l.s4 1966171168
        %v644 = vunpack.c.0.s8 %v643
        %v645 = vlaneseq
        %v646 = vshrl.u32 %v645, 7
        %v647 = vsub.s32 %v644, %v646
        %v648 = vrot.slane %v640, %v647
        %v649 = vcombine.high %v648, %v648
        %v651 = vunpack.c.l.s4 1966171168
        %v652 = vunpack.c.0.s8 %v651
        %v653 = vlaneseq
        %v654 = vshrl.u32 %v653, 7
        %v655 = vsub.s32 %v652, %v654
        %v656 = vrot.slane %v648, %v655
        %v658 = vunpack.c.l.s4 1966171168
        %v659 = vunpack.c.0.s8 %v658
        %v660 = vlaneseq
        %v661 = vshrl.u32 %v660, 7
        %v662 = vsub.s32 %v659, %v661
        %v663 = vrot.slane %v649, %v662
        %s664 = scalar_lea.vmem %s360, 16 [#allocation7]
        %v665 = vld [vmem:[%s664] sm:$0xff]
        %s666 = scalar_lea.vmem %s369, 16 [#allocation8]
        %v667 = vld [vmem:[%s666] sm:$0xff]
        %v668 = vld [vmem:[%s408] sm:$0xff]
        %v669 = vld [vmem:[%s408 + $0x8] sm:$0xff]
        %v670 = vlaneseq
        %v671 = vshrl.u32 %v670, 7
        %v672 = vsub.s32 0, %v671
        %v673 = vrot.slane %v631, %v672
        %v674 = vlaneseq
        %v675 = vshrl.u32 %v674, 7
        %v676 = vsub.s32 0, %v675
        %v677 = vrot.slane %v638, %v676
        %v680 = vmul.f32 %v673, %v665
        %v681 = vmul.f32 %v677, %v665
        %v682 = vlaneseq
        %v683 = vshrl.u32 %v682, 7
        %v684 = vsub.s32 0, %v683
        %v685 = vrot.slane %v656, %v684
        %v686 = vlaneseq
        %v687 = vshrl.u32 %v686, 7
        %v688 = vsub.s32 0, %v687
        %v689 = vrot.slane %v663, %v688
        %v692 = vmul.f32 %v685, %v667
        %v693 = vmul.f32 %v689, %v667
        %v694 = vsub.f32 %v680, %v692
        %v695 = vsub.f32 %v681, %v693
        %v696 = vadd.f32 %v668, %v694
        %v697 = vadd.f32 %v669, %v695
        %698 = vst [vmem:[%s408] sm:$0xff] %v696
        %699 = vst [vmem:[%s408 + $0x8] sm:$0xff] %v697
        %v700 = vld [vmem:[%s415] sm:$0xff]
        %v701 = vld [vmem:[%s415 + $0x8] sm:$0xff]
        %v702 = vmul.f32 %v673, %v667
        %v703 = vmul.f32 %v677, %v667
        %v704 = vmul.f32 %v685, %v665
        %v705 = vmul.f32 %v689, %v665
        %v706 = vadd.f32 %v702, %v704
        %v707 = vadd.f32 %v703, %v705
        %v708 = vadd.f32 %v700, %v706
        %v709 = vadd.f32 %v701, %v707
        %710 = vst [vmem:[%s415] sm:$0xff] %v708
        %711 = vst [vmem:[%s415 + $0x8] sm:$0xff] %v709
        %s712 = scalar_lea.vmem %s342, 6 [#allocation2]
        %v713 = vld [vmem:[%s712] sm:$0x3]
        %v716 = vunpack.c.l.s4 1966171168
        %v717 = vunpack.c.0.s8 %v716
        %v718 = vlaneseq
        %v719 = vshrl.u32 %v718, 7
        %v720 = vsub.s32 %v717, %v719
        %v721 = vrot.slane %v713, %v720
        %v722 = vcombine.high %v721, %v721
        %v724 = vunpack.c.l.s4 1966171168
        %v725 = vunpack.c.0.s8 %v724
        %v726 = vlaneseq
        %v727 = vshrl.u32 %v726, 7
        %v728 = vsub.s32 %v725, %v727
        %v729 = vrot.slane %v721, %v728
        %v731 = vunpack.c.l.s4 1966171168
        %v732 = vunpack.c.0.s8 %v731
        %v733 = vlaneseq
        %v734 = vshrl.u32 %v733, 7
        %v735 = vsub.s32 %v732, %v734
        %v736 = vrot.slane %v722, %v735
        %s737 = scalar_lea.vmem %s351, 6 [#allocation5]
        %v738 = vld [vmem:[%s737] sm:$0x3]
        %v741 = vunpack.c.l.s4 1966171168
        %v742 = vunpack.c.0.s8 %v741
        %v743 = vlaneseq
        %v744 = vshrl.u32 %v743, 7
        %v745 = vsub.s32 %v742, %v744
        %v746 = vrot.slane %v738, %v745
        %v747 = vcombine.high %v746, %v746
        %v749 = vunpack.c.l.s4 1966171168
        %v750 = vunpack.c.0.s8 %v749
        %v751 = vlaneseq
        %v752 = vshrl.u32 %v751, 7
        %v753 = vsub.s32 %v750, %v752
        %v754 = vrot.slane %v746, %v753
        %v756 = vunpack.c.l.s4 1966171168
        %v757 = vunpack.c.0.s8 %v756
        %v758 = vlaneseq
        %v759 = vshrl.u32 %v758, 7
        %v760 = vsub.s32 %v757, %v759
        %v761 = vrot.slane %v747, %v760
        %s762 = scalar_lea.vmem %s360, 24 [#allocation7]
        %v763 = vld [vmem:[%s762] sm:$0xff]
        %s764 = scalar_lea.vmem %s369, 24 [#allocation8]
        %v765 = vld [vmem:[%s764] sm:$0xff]
        %v766 = vld [vmem:[%s408] sm:$0xff]
        %v767 = vld [vmem:[%s408 + $0x8] sm:$0xff]
        %v768 = vlaneseq
        %v769 = vshrl.u32 %v768, 7
        %v770 = vsub.s32 0, %v769
        %v771 = vrot.slane %v729, %v770
        %v772 = vlaneseq
        %v773 = vshrl.u32 %v772, 7
        %v774 = vsub.s32 0, %v773
        %v775 = vrot.slane %v736, %v774
        %v778 = vmul.f32 %v771, %v763
        %v779 = vmul.f32 %v775, %v763
        %v780 = vlaneseq
        %v781 = vshrl.u32 %v780, 7
        %v782 = vsub.s32 0, %v781
        %v783 = vrot.slane %v754, %v782
        %v784 = vlaneseq
        %v785 = vshrl.u32 %v784, 7
        %v786 = vsub.s32 0, %v785
        %v787 = vrot.slane %v761, %v786
        %v790 = vmul.f32 %v783, %v765
        %v791 = vmul.f32 %v787, %v765
        %v792 = vsub.f32 %v778, %v790
        %v793 = vsub.f32 %v779, %v791
        %v794 = vadd.f32 %v766, %v792
        %v795 = vadd.f32 %v767, %v793
        %796 = vst [vmem:[%s408] sm:$0xff] %v794
        %797 = vst [vmem:[%s408 + $0x8] sm:$0xff] %v795
        %v798 = vld [vmem:[%s415] sm:$0xff]
        %v799 = vld [vmem:[%s415 + $0x8] sm:$0xff]
        %v800 = vmul.f32 %v771, %v765
        %v801 = vmul.f32 %v775, %v765
        %v802 = vmul.f32 %v783, %v763
        %v803 = vmul.f32 %v787, %v763
        %v804 = vadd.f32 %v800, %v802
        %v805 = vadd.f32 %v801, %v803
        %v806 = vadd.f32 %v798, %v804
        %v807 = vadd.f32 %v799, %v805
        %808 = vst [vmem:[%s415] sm:$0xff] %v806
        %809 = vst [vmem:[%s415 + $0x8] sm:$0xff] %v807
        %s810 = sand.u32 %s179, 1
        %s811 = scalar_lea.sflag [#allocation4], %s810
        %s812 = sand.u32 %s179, 1
        %s813 = smul.addr %s812, 16
        %s814 = scalar_lea.vmem [#allocation10], %s813
        %s815 = sand.u32 %s209, 1
        %s816 = scalar_lea.sflag [#allocation12], %s815
        %s817 = sand.u32 %s209, 1
        %s818 = smul.addr %s817, 16
        %s819 = scalar_lea.vmem [#allocation11], %s818
        // Predicated region
        $region53: #{tpu_custom_call.1} parent=35 // pred_check
          %p820 = pneg %p189
        $region54: #{tpu_custom_call.1} parent=35 // pred_check_branch
          %822 = sbr.rel (%p820) target = $region56
        $region55: #{tpu_custom_call.1} parent=35 // pred_region
          %s823 = smul.u32 2, %s39
          %s825 = ssub.s32 256, 256
          %826 = vsyncadd %s811, %s825
          %s827 = sadd.s32 %s38, %s823
          %s828 = smul.addr %s37, 2
          %s829 = sadd.s32 %s827, %s828
          %s830 = smul.addr %s829, 128
          %s831 = scalar_lea.hbm %s4, %s830
          %s832 = sshll.u32 %s814, 4
          %s833 = int_to_ptr.vmem [resolvable:$true] %s832
          %838 = dma.vmem_to_hbm [thread:$0]  %s833, 256, %s831, %s811, 128, 128, 8
        $region56: #{tpu_custom_call.1} parent=35 // pred_fallthru
          _
        // Predicated region
        $region57: #{tpu_custom_call.1} parent=35 // pred_check
          %p839 = pneg %p219
        $region58: #{tpu_custom_call.1} parent=35 // pred_check_branch
          %841 = sbr.rel (%p839) target = $region60
        $region59: #{tpu_custom_call.1} parent=35 // pred_region
          %s842 = smul.u32 2, %s39
          %s844 = ssub.s32 256, 256
          %845 = vsyncadd %s816, %s844
          %s846 = sadd.s32 %s38, %s842
          %s847 = smul.addr %s37, 2
          %s848 = sadd.s32 %s846, %s847
          %s849 = smul.addr %s848, 128
          %s850 = scalar_lea.hbm %s5, %s849
          %s851 = sshll.u32 %s819, 4
          %s852 = int_to_ptr.vmem [resolvable:$true] %s851
          %857 = dma.vmem_to_hbm [thread:$0]  %s852, 256, %s850, %s816, 128, 128, 8
        $region60: #{tpu_custom_call.1} parent=35 // pred_fallthru
          _
      $region36: #{tpu_custom_call.1} parent=5 // pred_fallthru
        _
      %p858 = scmp.le.s32.totalorder 2, %s27
      // Predicated region
      $region61: #{tpu_custom_call.1} parent=5 // pred_check
        %p859 = pneg %p858
      $region62: #{tpu_custom_call.1} parent=5 // pred_check_branch
        %861 = sbr.rel (%p859) target = $region64
      $region63: #{tpu_custom_call.1} parent=5 // pred_region
        %s862 = ssub.s32 %s27, 2
        // Predicated region
        $region65: #{tpu_custom_call.1} parent=63 // pred_check
          %p863 = pneg %p195
        $region66: #{tpu_custom_call.1} parent=63 // pred_check_branch
          %865 = sbr.rel (%p863) target = $region68
        $region67: #{tpu_custom_call.1} parent=63 // pred_region
          %s866 = sand.u32 %s180, 1
          %s867 = scalar_lea.sflag [#allocation4], %s866
          %s868 = sand.u32 %s180, 1
          %s869 = smul.addr %s868, 16
          %s870 = scalar_lea.vmem [#allocation10], %s869
          %871 = dma.done %s867, 256
        $region68: #{tpu_custom_call.1} parent=63 // pred_fallthru
          _
        // Predicated region
        $region69: #{tpu_custom_call.1} parent=63 // pred_check
          %p872 = pneg %p225
        $region70: #{tpu_custom_call.1} parent=63 // pred_check_branch
          %874 = sbr.rel (%p872) target = $region72
        $region71: #{tpu_custom_call.1} parent=63 // pred_region
          %s875 = sand.u32 %s210, 1
          %s876 = scalar_lea.sflag [#allocation12], %s875
          %s877 = sand.u32 %s210, 1
          %s878 = smul.addr %s877, 16
          %s879 = scalar_lea.vmem [#allocation11], %s878
          %880 = dma.done %s876, 256
        $region72: #{tpu_custom_call.1} parent=63 // pred_fallthru
          _
      $region64: #{tpu_custom_call.1} parent=5 // pred_fallthru
        _
    $region6: #{tpu_custom_call.1} parent=1 // loop_footer
      %s31 = sadd.s32 1, %s27
    $region7: #{tpu_custom_call.1} parent=1 // loop_footer_branch
      %26 = sbr.rel target = $region3
    $region8: #{tpu_custom_call.1} parent=1 // loop_exit
      _
    %881 = vsyncpa [#allocation3], 1
    %s882 = scalar_lea.sflag [#allocation3], 1
    %883 = vsyncpa %s882, 1
    %884 = vsyncpa [#allocation6], 1
    %s885 = scalar_lea.sflag [#allocation6], 1
    %886 = vsyncpa %s885, 1
    %887 = vsyncpa [#allocation9], 1
    %s888 = scalar_lea.sflag [#allocation9], 1
    %889 = vsyncpa %s888, 1
    %890 = vsyncpa [#allocation4], 1
    %s891 = scalar_lea.sflag [#allocation4], 1
    %892 = vsyncpa %s891, 1
    %893 = vsyncpa [#allocation12], 1
    %s894 = scalar_lea.sflag [#allocation12], 1
    %895 = vsyncpa %s894, 1

</llo_original>
